<compile_context>
chip_gen: v6e
topology: v6e:2x2x1
jax: 0.10.0
libtpu: 0.0.40
codegen_flags: <defaults>
</compile_context>

<pallas_src>
import functools

import jax
import jax.numpy as jnp
from jax.experimental import pallas as pl
from jax.experimental.pallas import tpu as pltpu


def _input_encoding_kernel(x_ref, mask_ref, pos_ref, w_ref, dg_ref, o_ref):
    # x_ref:    (TL, input_size)  f32
    # mask_ref: (TL, 1)           f32 in {0.0, 1.0}
    # pos_ref:  (TL, d_model)     f32  (time + keypoint emb + bias + given_emb[0]), resident
    # w_ref:    (input_size, d_model) f32, resident
    # dg_ref:   (1, d_model)      f32  (given_emb[1] - given_emb[0]), resident
    # o_ref:    (TL, d_model)     f32
    proj = jnp.dot(x_ref[...], w_ref[...], preferred_element_type=jnp.float32)
    o_ref[...] = proj + pos_ref[...] + mask_ref[...] * dg_ref[...]


def _pick_row_tile(N, L, row_bytes, target_rows=8192, vmem_budget=8 << 20):
    """Largest TL that (a) is a multiple of L, (b) divides N, (c) satisfies the
    (8,128) tiling rule (multiple of 8 or == full extent), (d) fits the budget."""
    B = N // L
    candidates = []
    for m in range(1, B + 1):
        if B % m:
            continue
        tl = L * m
        if tl % 8 == 0 or tl == N:   # tl == N always legal (block == full array dim)
            candidates.append(tl)
    budget_rows = max(L, vmem_budget // max(row_bytes, 1))
    cap = min(target_rows, budget_rows)
    fitting = [c for c in candidates if c <= cap]
    return max(fitting) if fitting else min(candidates)


def input_encoding_independent(x, missing_mask, params, *, max_seq_len, n_keypoints,
                               input_size, d_model):
    """Pallas implementation of InputEncodingIndependent.forward.

    x:            (B, max_seq_len, n_keypoints, input_size) float32
    missing_mask: (B, max_seq_len, n_keypoints) int32 in {0, 1}
    returns:      (B, L, d_model) float32, L = max_seq_len * n_keypoints
    """
    L = max_seq_len * n_keypoints
    B = x.shape[0]
    N = B * L

    # ---- glue: flatten + constant-index gathers, fold bias & given_emb base row ----
    x_flat = x.reshape(N, input_size).astype(jnp.float32)
    mask_flat = missing_mask.reshape(N, 1).astype(jnp.float32)

    t_idx = jnp.repeat(jnp.arange(max_seq_len), n_keypoints)      # repeat_interleave
    k_idx = jnp.tile(jnp.arange(n_keypoints), max_seq_len)        # repeat
    g = params["given_emb"].astype(jnp.float32)                   # (2, d_model)
    b = params["in_proj_b"].reshape(1, d_model).astype(jnp.float32)
    pos_emb = (params["time_emb"][t_idx] + params["keypoints_emb"][k_idx]
               + b + g[0:1, :])                                   # (L, d_model)
    dg = (g[1:2, :] - g[0:1, :])                                  # (1, d_model)
    w = params["in_proj_w"].T.astype(jnp.float32)                 # (input_size, d_model)

    # ---- tiling: big row blocks over the flattened (N, *) problem ----
    # per-row streaming bytes (double-buffered x/mask/out) + resident pos row
    row_bytes = 4 * (2 * (input_size + 1 + d_model) + d_model)
    TL = _pick_row_tile(N, L, row_bytes)
    assert N % TL == 0 and TL % L == 0
    n_blocks = N // TL

    # Pre-tile pos so its block is the whole (TL, d_model) table with a constant
    # index_map -> stays resident in VMEM across the grid (never re-DMA'd).
    pos_tiled = jnp.tile(pos_emb, (TL // L, 1))                   # (TL, d_model)

    out = pl.pallas_call(
        _input_encoding_kernel,
        out_shape=jax.ShapeDtypeStruct((N, d_model), jnp.float32),
        grid_spec=pltpu.PrefetchScalarGridSpec(
            num_scalar_prefetch=0,
            grid=(n_blocks,),
            in_specs=[
                pl.BlockSpec((TL, input_size), lambda i: (i, 0)),
                pl.BlockSpec((TL, 1), lambda i: (i, 0)),
                pl.BlockSpec((TL, d_model), lambda i: (0, 0)),        # resident
                pl.BlockSpec((input_size, d_model), lambda i: (0, 0)),  # resident
                pl.BlockSpec((1, d_model), lambda i: (0, 0)),           # resident
            ],
            out_specs=pl.BlockSpec((TL, d_model), lambda i: (i, 0)),
        ),
        compiler_params=pltpu.CompilerParams(
            dimension_semantics=("parallel",),          # independent blocks -> both TCs on v7x
            vmem_limit_bytes=32 * 1024 * 1024,          # explicit; safe on v5e/v6e/v7x
        ),
    )(x_flat, mask_flat, pos_tiled, w, dg)

    return out.reshape(B, L, d_model)


def _reference(x, missing_mask, params, *, max_seq_len, n_keypoints, input_size, d_model):
    L = max_seq_len * n_keypoints
    B = x.shape[0]
    xf = x.reshape(B, L, input_size)
    proj = xf @ params["in_proj_w"].T + params["in_proj_b"]
    t_idx = jnp.repeat(jnp.arange(max_seq_len), n_keypoints)
    k_idx = jnp.tile(jnp.arange(n_keypoints), max_seq_len)
    t = params["time_emb"][t_idx]
    k = params["keypoints_emb"][k_idx]
    m = missing_mask.reshape(B, L)
    g = params["given_emb"][m]
    return proj + t[None] + k[None] + g


if __name__ == "__main__":
    # Small shapes consistent with the module.
    B = 2
    max_seq_len = 8
    n_keypoints = 4
    input_size = 4
    d_model = 32
    L = max_seq_len * n_keypoints

    key = jax.random.PRNGKey(0)
    k_x, k_m, k_w, k_b, k_t, k_k, k_g = jax.random.split(key, 7)

    x = jax.random.normal(k_x, (B, max_seq_len, n_keypoints, input_size), jnp.float32)
    missing_mask = jax.random.bernoulli(k_m, 0.3, (B, max_seq_len, n_keypoints)).astype(jnp.int32)

    # Deterministic synthetic parameters (shapes per nn.Linear / nn.Embedding in __init__).
    params = {
        "in_proj_w": jax.random.normal(k_w, (d_model, input_size), jnp.float32) * 0.1,
        "in_proj_b": jax.random.normal(k_b, (d_model,), jnp.float32) * 0.1,
        "time_emb": jax.random.normal(k_t, (max_seq_len, d_model), jnp.float32),
        "keypoints_emb": jax.random.normal(k_k, (n_keypoints, d_model), jnp.float32),
        "given_emb": jax.random.normal(k_g, (2, d_model), jnp.float32),
    }

    run = functools.partial(
        input_encoding_independent,
        max_seq_len=max_seq_len, n_keypoints=n_keypoints,
        input_size=input_size, d_model=d_model,
    )

    out = jax.block_until_ready(run(x, missing_mask, params))

    ref = _reference(x, missing_mask, params,
                     max_seq_len=max_seq_len, n_keypoints=n_keypoints,
                     input_size=input_size, d_model=d_model)

    assert out.shape == (B, L, d_model)
    assert jnp.allclose(out, ref, atol=1e-5, rtol=1e-5)
    print("KERNEL_OK")
</pallas_src>

<mosaic_0001>
module attributes {stable_mosaic.version = 11 : i64} {
  func.func @_input_encoding_kernel(%arg0: i32, %arg1: memref<64x4xf32, #tpu.memory_space<vmem>>, %arg2: memref<64x1xf32, #tpu.memory_space<vmem>>, %arg3: memref<64x32xf32, #tpu.memory_space<vmem>>, %arg4: memref<4x32xf32, #tpu.memory_space<vmem>>, %arg5: memref<1x32xf32, #tpu.memory_space<vmem>>, %arg6: memref<64x32xf32, #tpu.memory_space<vmem>>) attributes {dimension_semantics = [#tpu.dimension_semantics<parallel>], iteration_bounds = array<i64: 1>, scalar_prefetch = 0 : i64, scratch_operands = 0 : i64, tpu.core_type = #tpu.core_type<tc>, window_params = [{transform_indices = @transform_0, window_bounds = array<i64: 64, 4>}, {transform_indices = @transform_1, window_bounds = array<i64: 64, 1>}, {pipeline_mode = #tpu.pipeline_mode<synchronous>, transform_indices = @transform_2, window_bounds = array<i64: 64, 32>}, {pipeline_mode = #tpu.pipeline_mode<synchronous>, transform_indices = @transform_3, window_bounds = array<i64: 4, 32>}, {pipeline_mode = #tpu.pipeline_mode<synchronous>, transform_indices = @transform_4, window_bounds = array<i64: 1, 32>}, {transform_indices = @transform_5, window_bounds = array<i64: 64, 32>}]} {
    %c0 = arith.constant 0 : index
    %c0_0 = arith.constant 0 : index
    %0 = vector.load %arg1[%c0, %c0_0] : memref<64x4xf32, #tpu.memory_space<vmem>>, vector<64x4xf32>
    %c0_1 = arith.constant 0 : index
    %c0_2 = arith.constant 0 : index
    %1 = vector.load %arg4[%c0_1, %c0_2] : memref<4x32xf32, #tpu.memory_space<vmem>>, vector<4x32xf32>
    %cst = arith.constant dense<0.000000e+00> : vector<64x32xf32>
    %2 = tpu.matmul %0, %1, %cst {dimension_numbers = #tpu.dot_dimension_numbers<[1], [0], [0], [1], [0, 0, 1, 1], [], []>} : vector<64x4xf32>, vector<4x32xf32>, vector<64x32xf32> -> vector<64x32xf32>
    %c0_3 = arith.constant 0 : index
    %c0_4 = arith.constant 0 : index
    %3 = vector.load %arg3[%c0_3, %c0_4] : memref<64x32xf32, #tpu.memory_space<vmem>>, vector<64x32xf32>
    %4 = arith.addf %2, %3 : vector<64x32xf32>
    %c0_5 = arith.constant 0 : index
    %c0_6 = arith.constant 0 : index
    %5 = vector.load %arg2[%c0_5, %c0_6] : memref<64x1xf32, #tpu.memory_space<vmem>>, vector<64x1xf32>
    %c0_7 = arith.constant 0 : index
    %c0_8 = arith.constant 0 : index
    %6 = vector.load %arg5[%c0_7, %c0_8] : memref<1x32xf32, #tpu.memory_space<vmem>>, vector<1x32xf32>
    %7 = vector.broadcast %5 : vector<64x1xf32> to vector<64x32xf32>
    %8 = vector.broadcast %6 : vector<1x32xf32> to vector<64x32xf32>
    %9 = arith.mulf %7, %8 : vector<64x32xf32>
    %10 = arith.addf %4, %9 : vector<64x32xf32>
    %c0_9 = arith.constant 0 : index
    %c0_10 = arith.constant 0 : index
    %11 = vector.load %arg6[%c0_9, %c0_10] : memref<64x32xf32, #tpu.memory_space<vmem>>, vector<64x32xf32>
    tpu.vector_store %arg6[%c0_9, %c0_10], %10 {strides = array<i32>} : memref<64x32xf32, #tpu.memory_space<vmem>>, vector<64x32xf32>,
    return
  }
  func.func @transform_0(%arg0: i32) -> (i32, i32) {
    %c0_i32 = arith.constant 0 : i32
    %c0_i32_0 = arith.constant 0 : i32
    return %arg0, %c0_i32 : i32, i32
  }
  func.func @transform_1(%arg0: i32) -> (i32, i32) {
    %c0_i32 = arith.constant 0 : i32
    %c0_i32_0 = arith.constant 0 : i32
    return %arg0, %c0_i32 : i32, i32
  }
  func.func @transform_2(%arg0: i32) -> (i32, i32) {
    %c0_i32 = arith.constant 0 : i32
    %c0_i32_0 = arith.constant 0 : i32
    %c0_i32_1 = arith.constant 0 : i32
    return %c0_i32, %c0_i32_0 : i32, i32
  }
  func.func @transform_3(%arg0: i32) -> (i32, i32) {
    %c0_i32 = arith.constant 0 : i32
    %c0_i32_0 = arith.constant 0 : i32
    %c0_i32_1 = arith.constant 0 : i32
    return %c0_i32, %c0_i32_0 : i32, i32
  }
  func.func @transform_4(%arg0: i32) -> (i32, i32) {
    %c0_i32 = arith.constant 0 : i32
    %c0_i32_0 = arith.constant 0 : i32
    %c0_i32_1 = arith.constant 0 : i32
    return %c0_i32, %c0_i32_0 : i32, i32
  }
  func.func @transform_5(%arg0: i32) -> (i32, i32) {
    %c0_i32 = arith.constant 0 : i32
    %c0_i32_0 = arith.constant 0 : i32
    return %arg0, %c0_i32 : i32, i32
  }
}

</mosaic_0001>

<llo_original>
// kernel: tpu_custom_call.1
$region0: #{tpu_custom_call.1}
  #allocation0 [shape = 'u32[]', space=smem, size = 0x4, offset = 0x4, fixed_abs, tag = 'smem constant byte address 0x4 - core index']
  #allocation1 [shape = 'u32[144,128]{1,0:T(1,128)}', space=vmem, size = 0x12000, scoped, tag = 'internal scratch']
  %s0 = inlined_call_operand.vmem [shape: f32[64,4], index: 0, kind: input, shape index: {}]
  %s1 = inlined_call_operand.vmem [shape: f32[64,1], index: 1, kind: input, shape index: {}]
  %s2 = inlined_call_operand.vmem [shape: f32[64,32], index: 2, kind: input, shape index: {}]
  %s3 = inlined_call_operand.vmem [shape: f32[4,32], index: 3, kind: input, shape index: {}]
  %s4 = inlined_call_operand.vmem [shape: f32[1,32], index: 4, kind: input, shape index: {}]
  %s5 = inlined_call_operand.vmem [shape: f32[64,32], index: 5, kind: output, shape index: {}]
  %s6 = sld [smem:[#allocation0]]
  $region30: #{tpu_custom_call.1} parent=0
    _
  %s8 = ssub.s32 1, %s6
  %s9 = scalar_select 0, %s8, %s6
  // Predicated region
  $region2: #{tpu_custom_call.1} parent=0 // pred_check
    _
  $region3: #{tpu_custom_call.1} parent=0 // pred_check_branch
    %11 = sbr.rel (0) target = $region5
  $region4: #{tpu_custom_call.1} parent=0 // pred_region
    _
  $region5: #{tpu_custom_call.1} parent=0 // pred_fallthru
    _
  // Predicated region
  $region6: #{tpu_custom_call.1} parent=0 // pred_check
    _
  $region7: #{tpu_custom_call.1} parent=0 // pred_check_branch
    %13 = sbr.rel (0) target = $region9
  $region8: #{tpu_custom_call.1} parent=0 // pred_region
    _
  $region9: #{tpu_custom_call.1} parent=0 // pred_fallthru
    _
  // Predicated region
  $region10: #{tpu_custom_call.1} parent=0 // pred_check
    _
  $region11: #{tpu_custom_call.1} parent=0 // pred_check_branch
    %15 = sbr.rel (0) target = $region13
  $region12: #{tpu_custom_call.1} parent=0 // pred_region
    _
  $region13: #{tpu_custom_call.1} parent=0 // pred_fallthru
    _
  // Predicated region
  $region14: #{tpu_custom_call.1} parent=0 // pred_check
    _
  $region15: #{tpu_custom_call.1} parent=0 // pred_check_branch
    %17 = sbr.rel (0) target = $region17
  $region16: #{tpu_custom_call.1} parent=0 // pred_region
    _
  $region17: #{tpu_custom_call.1} parent=0 // pred_fallthru
    _
  // Predicated region
  $region18: #{tpu_custom_call.1} parent=0 // pred_check
    _
  $region19: #{tpu_custom_call.1} parent=0 // pred_check_branch
    %19 = sbr.rel (0) target = $region21
  $region20: #{tpu_custom_call.1} parent=0 // pred_region
    _
  $region21: #{tpu_custom_call.1} parent=0 // pred_fallthru
    _
  %v20 = vld [vmem:[%s0] sm:$0xff]
  %v21 = vld [vmem:[%s0 + $0x8] sm:$0xff]
  %v22 = vld [vmem:[%s0 + $0x10] sm:$0xff]
  %v23 = vld [vmem:[%s0 + $0x18] sm:$0xff]
  %v24 = vld [vmem:[%s0 + $0x20] sm:$0xff]
  %v25 = vld [vmem:[%s0 + $0x28] sm:$0xff]
  %v26 = vld [vmem:[%s0 + $0x30] sm:$0xff]
  %v27 = vld [vmem:[%s0 + $0x38] sm:$0xff]
  %v28 = vld [vmem:[%s3] sm:$0xf]
  %v29 = vld [vmem:[%s2] sm:$0xff]
  %v30 = vld [vmem:[%s2 + $0x8] sm:$0xff]
  %v31 = vld [vmem:[%s2 + $0x10] sm:$0xff]
  %v32 = vld [vmem:[%s2 + $0x18] sm:$0xff]
  %v33 = vld [vmem:[%s2 + $0x20] sm:$0xff]
  %v34 = vld [vmem:[%s2 + $0x28] sm:$0xff]
  %v35 = vld [vmem:[%s2 + $0x30] sm:$0xff]
  %v36 = vld [vmem:[%s2 + $0x38] sm:$0xff]
  %vm37 = vcmask 31744
  %v39 = vsel %vm37, %v20, 0
  %v42 = vsel %vm37, %v21, 0
  %v45 = vsel %vm37, %v22, 0
  %v48 = vsel %vm37, %v23, 0
  %v51 = vsel %vm37, %v24, 0
  %v54 = vsel %vm37, %v25, 0
  %v57 = vsel %vm37, %v26, 0
  %v60 = vsel %vm37, %v27, 0
  %vm62 = vcmask 1043456
  %v64 = vsel %vm62, %v28, 0
  %66 = vmatprep.subr.mxu0 0.0
  %67 = vmatpush1.msra.mxu0 0.0
  %68 = vmatprep.subr.mxu0 0.0
  %69 = vmatpush1.msra.mxu0 0.0
  %70 = vmatprep.subr.mxu0 0.0
  %71 = vmatpush1.msra.mxu0 0.0
  %72 = vmatprep.subr.mxu0 0.0
  %73 = vmatpush1.msra.mxu0 0.0
  %74 = vmatprep.subr.mxu0 0.0
  %75 = vmatpush1.msra.mxu0 0.0
  %76 = vmatprep.subr.mxu0 0.0
  %77 = vmatpush1.msra.mxu0 0.0
  %78 = vmatprep.subr.mxu0 0.0
  %79 = vmatpush1.msra.mxu0 0.0
  %80 = vmatprep.subr.mxu0 0.0
  %81 = vmatpush1.msra.mxu0 0.0
  %82 = vmatprep.subr.mxu0 0.0
  %83 = vmatpush1.msra.mxu0 0.0
  %84 = vmatprep.subr.mxu0 0.0
  %85 = vmatpush1.msra.mxu0 0.0
  %86 = vmatprep.subr.mxu0 0.0
  %87 = vmatpush1.msra.mxu0 0.0
  %88 = vmatprep.subr.mxu0 0.0
  %89 = vmatpush1.msra.mxu0 0.0
  %90 = vmatprep.subr.mxu0 0.0
  %91 = vmatpush1.msra.mxu0 0.0
  %92 = vmatprep.subr.mxu0 0.0
  %93 = vmatpush1.msra.mxu0 0.0
  %94 = vmatprep.subr.mxu0 0.0
  %95 = vmatpush1.msra.mxu0 0.0
  %96 = vmatprep.subr.mxu0 0.0
  %97 = vmatpush1.msra.mxu0 %v64
  %98 = vmatprep.subr.mxu0 0.0
  %99 = vmatpush2.msra.mxu0 0.0
  %100 = vmatprep.subr.mxu0 0.0
  %101 = vmatpush2.msra.mxu0 0.0
  %102 = vmatprep.subr.mxu0 0.0
  %103 = vmatpush2.msra.mxu0 0.0
  %104 = vmatprep.subr.mxu0 0.0
  %105 = vmatpush2.msra.mxu0 0.0
  %106 = vmatprep.subr.mxu0 0.0
  %107 = vmatpush2.msra.mxu0 0.0
  %108 = vmatprep.subr.mxu0 0.0
  %109 = vmatpush2.msra.mxu0 0.0
  %110 = vmatprep.subr.mxu0 0.0
  %111 = vmatpush2.msra.mxu0 0.0
  %112 = vmatprep.subr.mxu0 0.0
  %113 = vmatpush2.msra.mxu0 0.0
  %114 = vmatprep.subr.mxu0 0.0
  %115 = vmatpush2.msra.mxu0 0.0
  %116 = vmatprep.subr.mxu0 0.0
  %117 = vmatpush2.msra.mxu0 0.0
  %118 = vmatprep.subr.mxu0 0.0
  %119 = vmatpush2.msra.mxu0 0.0
  %120 = vmatprep.subr.mxu0 0.0
  %121 = vmatpush2.msra.mxu0 0.0
  %122 = vmatprep.subr.mxu0 0.0
  %123 = vmatpush2.msra.mxu0 0.0
  %124 = vmatprep.subr.mxu0 0.0
  %125 = vmatpush2.msra.mxu0 0.0
  %126 = vmatprep.subr.mxu0 0.0
  %127 = vmatpush2.msra.mxu0 0.0
  %128 = vmatprep.subr.mxu0 0.0
  %129 = vmatpush2.msra.mxu0 0.0
  %130 = vmatprep.mubr.f32.mxu0 0.0
  %131 = vmatmul.mubr.f32.gmra.mxu0 %v39
  %v132 = vpop.f32.mrf.mxu0
  %v133 = vadd.f32 %v29, %v132
  %v134 = vpop.f32.mrf.mxu0
  %135 = vmatprep.mubr.f32.mxu0 0.0
  %136 = vmatmul.mubr.f32.gmra.mxu0 %v42
  %v137 = vpop.f32.mrf.mxu0
  %v138 = vadd.f32 %v30, %v137
  %v139 = vpop.f32.mrf.mxu0
  %140 = vmatprep.mubr.f32.mxu0 0.0
  %141 = vmatmul.mubr.f32.gmra.mxu0 %v45
  %v142 = vpop.f32.mrf.mxu0
  %v143 = vadd.f32 %v31, %v142
  %v144 = vpop.f32.mrf.mxu0
  %145 = vmatprep.mubr.f32.mxu0 0.0
  %146 = vmatmul.mubr.f32.gmra.mxu0 %v48
  %v147 = vpop.f32.mrf.mxu0
  %v148 = vadd.f32 %v32, %v147
  %v149 = vpop.f32.mrf.mxu0
  %150 = vmatprep.mubr.f32.mxu0 0.0
  %151 = vmatmul.mubr.f32.gmra.mxu0 %v51
  %v152 = vpop.f32.mrf.mxu0
  %v153 = vadd.f32 %v33, %v152
  %v154 = vpop.f32.mrf.mxu0
  %155 = vmatprep.mubr.f32.mxu0 0.0
  %156 = vmatmul.mubr.f32.gmra.mxu0 %v54
  %v157 = vpop.f32.mrf.mxu0
  %v158 = vadd.f32 %v34, %v157
  %v159 = vpop.f32.mrf.mxu0
  %160 = vmatprep.mubr.f32.mxu0 0.0
  %161 = vmatmul.mubr.f32.gmra.mxu0 %v57
  %v162 = vpop.f32.mrf.mxu0
  %v163 = vadd.f32 %v35, %v162
  %v164 = vpop.f32.mrf.mxu0
  %165 = vmatprep.mubr.f32.mxu0 0.0
  %166 = vmatmul.mubr.f32.gmra.mxu0 %v60
  %v167 = vpop.f32.mrf.mxu0
  %v168 = vadd.f32 %v36, %v167
  %v169 = vpop.f32.mrf.mxu0
  %170 = vdwg.mxu0
  %v171 = vld [vmem:[%s1] sm:$0xff]
  %v172 = vld [vmem:[%s1 + $0x8] sm:$0xff]
  %v173 = vld [vmem:[%s1 + $0x10] sm:$0xff]
  %v174 = vld [vmem:[%s1 + $0x18] sm:$0xff]
  %v175 = vld [vmem:[%s1 + $0x20] sm:$0xff]
  %v176 = vld [vmem:[%s1 + $0x28] sm:$0xff]
  %v177 = vld [vmem:[%s1 + $0x30] sm:$0xff]
  %v178 = vld [vmem:[%s1 + $0x38] sm:$0xff]
  %v179 = vld [vmem:[%s4] sm:$0x1]
  %181 = vset.pattern.permute.xlu0 0
  %182 = vperm.xlu0 %181, %v171
  %v183 = vpop.permute.xlu0 %182
  %186 = vset.pattern.permute.xlu0 0
  %187 = vperm.xlu0 %186, %v172
  %v188 = vpop.permute.xlu0 %187
  %191 = vset.pattern.permute.xlu0 0
  %192 = vperm.xlu0 %191, %v173
  %v193 = vpop.permute.xlu0 %192
  %196 = vset.pattern.permute.xlu0 0
  %197 = vperm.xlu0 %196, %v174
  %v198 = vpop.permute.xlu0 %197
  %201 = vset.pattern.permute.xlu0 0
  %202 = vperm.xlu0 %201, %v175
  %v203 = vpop.permute.xlu0 %202
  %206 = vset.pattern.permute.xlu0 0
  %207 = vperm.xlu0 %206, %v176
  %v208 = vpop.permute.xlu0 %207
  %211 = vset.pattern.permute.xlu0 0
  %212 = vperm.xlu0 %211, %v177
  %v213 = vpop.permute.xlu0 %212
  %216 = vset.pattern.permute.xlu0 0
  %217 = vperm.xlu0 %216, %v178
  %v218 = vpop.permute.xlu0 %217
  %v221 = vlaneseq
  %v222 = vshrl.u32 %v221, 7
  %v223 = vsub.s32 0, %v222
  %v224 = vrot.slane %v179, %v223
  %v226 = vmul.f32 %v183, %v224
  %v227 = vmul.f32 %v188, %v224
  %v228 = vmul.f32 %v193, %v224
  %v229 = vmul.f32 %v198, %v224
  %v230 = vmul.f32 %v203, %v224
  %v231 = vmul.f32 %v208, %v224
  %v232 = vmul.f32 %v213, %v224
  %v233 = vmul.f32 %v218, %v224
  %v234 = vadd.f32 %v133, %v226
  %v235 = vadd.f32 %v138, %v227
  %v236 = vadd.f32 %v143, %v228
  %v237 = vadd.f32 %v148, %v229
  %v238 = vadd.f32 %v153, %v230
  %v239 = vadd.f32 %v158, %v231
  %v240 = vadd.f32 %v163, %v232
  %v241 = vadd.f32 %v168, %v233
  %vm242 = vcmask 261120
  %243 = vst.msk [vmem:[%s5] sm:$0xff] %vm242, %v234
  %244 = vst.msk [vmem:[%s5 + $0x8] sm:$0xff] %vm242, %v235
  %245 = vst.msk [vmem:[%s5 + $0x10] sm:$0xff] %vm242, %v236
  %246 = vst.msk [vmem:[%s5 + $0x18] sm:$0xff] %vm242, %v237
  %247 = vst.msk [vmem:[%s5 + $0x20] sm:$0xff] %vm242, %v238
  %248 = vst.msk [vmem:[%s5 + $0x28] sm:$0xff] %vm242, %v239
  %249 = vst.msk [vmem:[%s5 + $0x30] sm:$0xff] %vm242, %v240
  %250 = vst.msk [vmem:[%s5 + $0x38] sm:$0xff] %vm242, %v241
  // Predicated region
  $region22: #{tpu_custom_call.1} parent=0 // pred_check
    _
  $region23: #{tpu_custom_call.1} parent=0 // pred_check_branch
    %252 = sbr.rel (0) target = $region25
  $region24: #{tpu_custom_call.1} parent=0 // pred_region
    _
  $region25: #{tpu_custom_call.1} parent=0 // pred_fallthru
    _
  // Predicated region
  $region26: #{tpu_custom_call.1} parent=0 // pred_check
    _
  $region27: #{tpu_custom_call.1} parent=0 // pred_check_branch
    %254 = sbr.rel (0) target = $region29
  $region28: #{tpu_custom_call.1} parent=0 // pred_region
    _
  $region29: #{tpu_custom_call.1} parent=0 // pred_fallthru
    _

</llo_original>
